<compile_context>
chip_gen: v7x
topology: tpu7x:2x2x1
jax: 0.10.0
libtpu: 0.0.40
codegen_flags: <defaults>
</compile_context>

<pallas_src>
import functools

import jax
import jax.numpy as jnp
import numpy as np
from jax import lax
from jax.experimental import pallas as pl
from jax.experimental.pallas import tpu as pltpu


def _round_up(x, m):
    return (x + m - 1) // m * m


def _focal_dice_gram_kernel(logits_ref, labels_ref, out_ref, *,
                            hw, tile, n_cls, need_mask):
    """Accumulates the (2C, 2C) Gram matrix of [softmax ; one-hot] rows.

    logits_ref: (C, tile)  raw logits (bf16/f32), straight from NCHW HBM
    labels_ref: (1, tile)  integer labels (tail columns may hold garbage)
    out_ref:    (2C, 2C)   f32 accumulator, VMEM-resident across the chunk axis
    """
    x = logits_ref[...].astype(jnp.float32)                     # (C, tile)

    # Softmax over the class (sublane) axis; approx reciprocal -> EUP slot.
    m = jnp.max(x, axis=0, keepdims=True)                       # (1, tile)
    e = jnp.exp(x - m)
    inv = pl.reciprocal(jnp.sum(e, axis=0, keepdims=True), approx=True)
    score = e * inv                                             # (C, tile)

    labels = labels_ref[...].astype(jnp.int32)                  # (1, tile)

    if need_mask:
        # Only compiled when HW % tile != 0.  The tail block reads past the
        # logical end of the array: the select on `score` also kills any
        # NaN/Inf produced by the garbage softmax columns, and the sentinel
        # class `n_cls` never matches the one-hot iota below.
        col = pl.program_id(1) * tile + lax.broadcasted_iota(
            jnp.int32, (1, tile), 1)
        valid = col < hw
        score = jnp.where(valid, score, 0.0)
        labels = jnp.where(valid, labels, n_cls)

    cls = lax.broadcasted_iota(jnp.int32, (n_cls, tile), 0)
    onehot = (labels == cls).astype(jnp.float32)                # (C, tile)

    # Product + reduction on the (idle) MXU: one tiny Gram matmul per block.
    mat = jnp.concatenate([score, onehot], axis=0)              # (2C, tile)
    g = lax.dot_general(mat, mat, (((1,), (1,)), ((), ())),
                        preferred_element_type=jnp.float32)     # (2C, 2C)

    @pl.when(pl.program_id(1) == 0)
    def _():
        out_ref[...] = jnp.zeros_like(out_ref)
    out_ref[...] += g


def focal_dice_loss(logits, labels, n_classes, beta=2.0, weight=None,
                    label_dtype=jnp.int32):
    """logits: (N, C, H, W) float; labels: (N, H, W) int. Returns scalar loss."""
    N, C, H, W = logits.shape
    assert C == n_classes
    HW = H * W

    # bf16 logits stay bf16 in HBM (kernel upcasts); everything else -> f32.
    if logits.dtype not in (jnp.bfloat16, jnp.float32):
        logits = logits.astype(jnp.float32)
    x = logits.reshape(N, C, HW)                    # pure view, no transpose
    # NOTE: on v5e/v6e (memory-bound), passing label_dtype=jnp.int8 (valid for
    # n_classes <= 127) cuts label HBM read bytes 4x for a further BW win.
    y = labels.reshape(N, 1, HW).astype(label_dtype)

    # Generation-aware tile sizing from a VMEM budget.
    try:
        vmem_cap = int(pltpu.get_tpu_info().vmem_capacity_bytes)
    except Exception:
        vmem_cap = 64 * 1024 * 1024
    budget = min(vmem_cap // 4, 8 * 1024 * 1024)
    in_bytes = jnp.dtype(x.dtype).itemsize
    lbl_bytes = jnp.dtype(y.dtype).itemsize
    # Up to triple-buffered input blocks + ~8 f32 (C, tile) temporaries.
    per_lane = 3 * (C * in_bytes + lbl_bytes) + 8 * C * 4
    tile = (budget // per_lane) // 128 * 128
    tile = max(128, min(tile, 8 * 1024))                            # cap at 8K lanes
    tile = min(tile, max(128, _round_up(max(HW // 8, 1), 128)))     # >= ~8 chunks
    tile = int(min(tile, _round_up(HW, 128)))

    num_chunks = -(-HW // tile)           # cdiv; no HBM-doubling wrapper pad
    need_mask = (HW % tile) != 0

    kernel = functools.partial(_focal_dice_gram_kernel, hw=HW, tile=tile,
                               n_cls=C, need_mask=need_mask)

    # Triple-buffer the logits stream on big-VMEM parts (v5e/v6e) when the
    # chunk loop is long enough for it to matter; default 2 elsewhere.
    logits_spec_kwargs = {}
    if vmem_cap >= 100 * 1024 * 1024 and num_chunks >= 4:
        logits_spec_kwargs = dict(pipeline_mode=pl.Buffered(3))

    partials = pl.pallas_call(
        kernel,
        out_shape=jax.ShapeDtypeStruct((N, 2 * C, 2 * C), jnp.float32),
        grid=(N, num_chunks),
        in_specs=[
            pl.BlockSpec((None, C, tile), lambda n, i: (n, 0, i),
                         **logits_spec_kwargs),                    # logits
            pl.BlockSpec((None, 1, tile), lambda n, i: (n, 0, i)),  # labels
        ],
        # Same output block across the chunk axis -> VMEM-resident accumulator;
        # one writeback per batch element instead of one per chunk.
        out_specs=pl.BlockSpec((None, 2 * C, 2 * C), lambda n, i: (n, 0, 0)),
        compiler_params=pltpu.CompilerParams(
            dimension_semantics=("parallel", "arbitrary"),
            vmem_limit_bytes=int(min(vmem_cap * 3 // 4, 96 * 1024 * 1024))),
    )(x, y)

    # Tiny epilogue in plain JAX: reduce over batch, read Gram diagonals,
    # dice, pow, weight, mean.
    g = jnp.sum(partials, axis=0)                   # (2C, 2C)
    zsum = jnp.diagonal(g[:C, :C])
    inter = jnp.diagonal(g[:C, C:])
    ysum = jnp.diagonal(g[C:, C:])
    smooth = 1.0
    dice = (2.0 * inter + smooth) / (zsum + ysum + smooth)
    per_class = 1.0 - dice ** (1.0 / beta)
    if weight is None:
        w = jnp.ones((C,), jnp.float32)
    else:
        w = jnp.asarray(weight, jnp.float32).reshape(C)
    return jnp.sum(per_class * w) / n_classes


def focal_dice_loss_ref(logits, labels, n_classes, beta=2.0, weight=None):
    """Pure-JAX reference mirroring the PyTorch module."""
    if weight is None:
        weight = [1.0] * n_classes
    probs = jax.nn.softmax(logits.astype(jnp.float32), axis=1)
    onehot = jax.nn.one_hot(labels, n_classes, axis=1, dtype=jnp.float32)
    smooth = 1.0
    loss = 0.0
    for i in range(n_classes):
        s = probs[:, i]
        t = onehot[:, i]
        inter = jnp.sum(s * t)
        ys = jnp.sum(t * t)
        zs = jnp.sum(s * s)
        dice = (2.0 * inter + smooth) / (zs + ys + smooth)
        loss += (1.0 - dice ** (1.0 / beta)) * weight[i]
    return loss / n_classes


if __name__ == "__main__":
    key = jax.random.PRNGKey(0)
    k1, k2, k3, k4 = jax.random.split(key, 4)

    # Case 1: HW divisible by the tile (mask path not compiled).
    N, C, H, W = 2, 4, 16, 16
    logits = jax.random.normal(k1, (N, C, H, W), dtype=jnp.float32)
    labels = jax.random.randint(k2, (N, H, W), 0, C, dtype=jnp.int32)

    loss = jax.block_until_ready(
        focal_dice_loss(logits, labels, n_classes=C, beta=2.0))
    loss_ref = jax.block_until_ready(
        focal_dice_loss_ref(logits, labels, n_classes=C, beta=2.0))
    # approx-reciprocal softmax + MXU Gram accumulation => slightly loose tol.
    np.testing.assert_allclose(np.asarray(loss), np.asarray(loss_ref),
                               rtol=5e-3, atol=1e-3)

    # Case 2: ragged HW (exercises the in-kernel tail mask, no wrapper pad).
    H2 = W2 = 10
    logits2 = jax.random.normal(k3, (N, C, H2, W2), dtype=jnp.float32)
    labels2 = jax.random.randint(k4, (N, H2, W2), 0, C, dtype=jnp.int32)

    loss2 = jax.block_until_ready(
        focal_dice_loss(logits2, labels2, n_classes=C, beta=2.0))
    loss2_ref = jax.block_until_ready(
        focal_dice_loss_ref(logits2, labels2, n_classes=C, beta=2.0))
    np.testing.assert_allclose(np.asarray(loss2), np.asarray(loss2_ref),
                               rtol=5e-3, atol=1e-3)

    print("KERNEL_OK")
</pallas_src>

<mosaic_0001>
module attributes {stable_mosaic.version = 11 : i64} {
  func.func @_focal_dice_gram_kernel(%arg0: i32, %arg1: i32, %arg2: memref<1x4x128xf32, #tpu.memory_space<vmem>>, %arg3: memref<1x1x128xi32, #tpu.memory_space<vmem>>, %arg4: memref<1x8x8xf32, #tpu.memory_space<vmem>>) attributes {dimension_semantics = [#tpu.dimension_semantics<parallel>, #tpu.dimension_semantics<arbitrary>], iteration_bounds = array<i64: 2, 2>, scalar_prefetch = 0 : i64, scratch_operands = 0 : i64, tpu.core_type = #tpu.core_type<tc>, window_params = [{transform_indices = @transform_0, window_bounds = array<i64: 1, 4, 128>}, {transform_indices = @transform_1, window_bounds = array<i64: 1, 1, 128>}, {transform_indices = @transform_2, window_bounds = array<i64: 1, 8, 8>}]} {
    %c0 = arith.constant 0 : index
    %c0_0 = arith.constant 0 : index
    %c0_1 = arith.constant 0 : index
    %0 = vector.load %arg2[%c0, %c0_0, %c0_1] : memref<1x4x128xf32, #tpu.memory_space<vmem>>, vector<1x4x128xf32>
    %1 = vector.shape_cast %0 : vector<1x4x128xf32> to vector<4x128xf32>
    %cst = arith.constant dense<0xFF800000> : vector<128xf32>
    %2 = vector.multi_reduction <maximumf>, %1, %cst [0] : vector<4x128xf32> to vector<128xf32>
    %3 = vector.shape_cast %2 : vector<128xf32> to vector<1x128xf32>
    %4 = vector.broadcast %3 : vector<1x128xf32> to vector<4x128xf32>
    %5 = arith.subf %1, %4 : vector<4x128xf32>
    %6 = math.exp %5 : vector<4x128xf32>
    %cst_2 = arith.constant dense<0.000000e+00> : vector<128xf32>
    %7 = vector.multi_reduction <add>, %6, %cst_2 [0] : vector<4x128xf32> to vector<128xf32>
    %8 = vector.shape_cast %7 : vector<128xf32> to vector<1x128xf32>
    %9 = tpu.reciprocal %8 {approx = true} : vector<1x128xf32> -> vector<1x128xf32>
    %10 = vector.broadcast %9 : vector<1x128xf32> to vector<4x128xf32>
    %11 = arith.mulf %6, %10 : vector<4x128xf32>
    %c0_3 = arith.constant 0 : index
    %c0_4 = arith.constant 0 : index
    %c0_5 = arith.constant 0 : index
    %12 = vector.load %arg3[%c0_3, %c0_4, %c0_5] : memref<1x1x128xi32, #tpu.memory_space<vmem>>, vector<1x1x128xi32>
    %13 = vector.shape_cast %12 : vector<1x1x128xi32> to vector<1x128xi32>
    %14 = tpu.iota {dimensions = array<i32: 0>} : vector<4x128xi32>
    %15 = vector.broadcast %13 : vector<1x128xi32> to vector<4x128xi32>
    %16 = arith.cmpi eq, %15, %14 : vector<4x128xi32>
    %17 = arith.extui %16 : vector<4x128xi1> to vector<4x128xi32>
    %18 = arith.sitofp %17 : vector<4x128xi32> to vector<4x128xf32>
    %19 = tpu.concatenate %11, %18 in 0 : vector<4x128xf32>, vector<4x128xf32> -> vector<8x128xf32>
    %cst_6 = arith.constant dense<0.000000e+00> : vector<8x8xf32>
    %20 = tpu.matmul %19, %19, %cst_6 {dimension_numbers = #tpu.dot_dimension_numbers<[1], [1], [0], [0], [0, 0, 1, 0], [], []>} : vector<8x128xf32>, vector<8x128xf32>, vector<8x8xf32> -> vector<8x8xf32>
    %c0_i32 = arith.constant 0 : i32
    %21 = arith.cmpi eq, %arg1, %c0_i32 : i32
    %22 = arith.extui %21 : i1 to i32
    %c0_i32_7 = arith.constant 0 : i32
    %23 = arith.cmpi ne, %22, %c0_i32_7 : i32
    scf.if %23 {
      %cst_14 = arith.constant 0.000000e+00 : f32
      %30 = vector.broadcast %cst_14 : f32 to vector<8x8xf32>
      %c0_15 = arith.constant 0 : index
      %c0_16 = arith.constant 0 : index
      %c0_17 = arith.constant 0 : index
      %31 = vector.load %arg4[%c0_15, %c0_16, %c0_17] : memref<1x8x8xf32, #tpu.memory_space<vmem>>, vector<1x8x8xf32>
      %32 = vector.shape_cast %31 : vector<1x8x8xf32> to vector<8x8xf32>
      %33 = vector.shape_cast %30 : vector<8x8xf32> to vector<1x8x8xf32>
      tpu.vector_store %arg4[%c0_15, %c0_16, %c0_17], %33 {strides = array<i32>} : memref<1x8x8xf32, #tpu.memory_space<vmem>>, vector<1x8x8xf32>,
    } else {
    }
    %c0_8 = arith.constant 0 : index
    %c0_9 = arith.constant 0 : index
    %c0_10 = arith.constant 0 : index
    %24 = vector.load %arg4[%c0_8, %c0_9, %c0_10] : memref<1x8x8xf32, #tpu.memory_space<vmem>>, vector<1x8x8xf32>
    %25 = vector.shape_cast %24 : vector<1x8x8xf32> to vector<8x8xf32>
    %26 = arith.addf %25, %20 : vector<8x8xf32>
    %c0_11 = arith.constant 0 : index
    %c0_12 = arith.constant 0 : index
    %c0_13 = arith.constant 0 : index
    %27 = vector.load %arg4[%c0_11, %c0_12, %c0_13] : memref<1x8x8xf32, #tpu.memory_space<vmem>>, vector<1x8x8xf32>
    %28 = vector.shape_cast %27 : vector<1x8x8xf32> to vector<8x8xf32>
    %29 = vector.shape_cast %26 : vector<8x8xf32> to vector<1x8x8xf32>
    tpu.vector_store %arg4[%c0_11, %c0_12, %c0_13], %29 {strides = array<i32>} : memref<1x8x8xf32, #tpu.memory_space<vmem>>, vector<1x8x8xf32>,
    return
  }
  func.func @transform_0(%arg0: i32, %arg1: i32) -> (i32, i32, i32) {
    %c0_i32 = arith.constant 0 : i32
    %c0_i32_0 = arith.constant 0 : i32
    return %arg0, %c0_i32, %arg1 : i32, i32, i32
  }
  func.func @transform_1(%arg0: i32, %arg1: i32) -> (i32, i32, i32) {
    %c0_i32 = arith.constant 0 : i32
    %c0_i32_0 = arith.constant 0 : i32
    return %arg0, %c0_i32, %arg1 : i32, i32, i32
  }
  func.func @transform_2(%arg0: i32, %arg1: i32) -> (i32, i32, i32) {
    %c0_i32 = arith.constant 0 : i32
    %c0_i32_0 = arith.constant 0 : i32
    %c0_i32_1 = arith.constant 0 : i32
    return %arg0, %c0_i32, %c0_i32_0 : i32, i32, i32
  }
}

</mosaic_0001>

<llo_original>
// kernel: tpu_custom_call.1
$region0: #{tpu_custom_call.1}
  #allocation0 [shape = 'u32[]', space=smem, size = 0x4, offset = 0x4, fixed_abs, tag = 'smem constant byte address 0x4 - core index']
  #allocation1 [shape = 'u32[144,128]{1,0:T(1,128)}', space=vmem, size = 0x12000, scoped, tag = 'internal scratch']
  %s0 = inlined_call_operand.hbm [shape: f32[2,4,256], index: 0, kind: input, shape index: {}]
  %s1 = inlined_call_operand.hbm [shape: s32[2,1,256], index: 1, kind: input, shape index: {}]
  %s2 = inlined_call_operand.hbm [shape: f32[2,8,8], index: 2, kind: output, shape index: {}]
  %s3 = sld [smem:[#allocation0]]
  $region53: #{tpu_custom_call.1} parent=0
    _
  %s5 = ssub.s32 1, %s3
  %s6 = scalar_select 0, %s5, %s3
  $region1: #{tpu_custom_call.1} parent=0
    #allocation2 [shape = 'u8[4096]{0}', space=vmem, size = 0x1000, scoped, tag = 'input window, operand 0']
    #allocation3 [shape = 's32[2]{0}', space=sflag, size = 0x8, scoped, tag = 'scoped memory for tpu_custom_call.1']
    #allocation4 [shape = 's32[2]{0}', space=sflag, size = 0x8, scoped, tag = 'scoped memory for tpu_custom_call.1']
    #allocation5 [shape = 'u8[1024]{0}', space=vmem, size = 0x400, scoped, tag = 'input window, operand 1']
    #allocation6 [shape = 's32[2]{0}', space=sflag, size = 0x8, scoped, tag = 'scoped memory for tpu_custom_call.1']
    #allocation7 [shape = 'u8[8192]{0}', space=vmem, size = 0x2000, scoped, tag = 'output window, operand 0']
    %7 = vsyncpa [#allocation3], 0
    %s8 = scalar_lea.sflag [#allocation3], 1
    %9 = vsyncpa %s8, 0
    %10 = vsyncpa [#allocation6], 0
    %s11 = scalar_lea.sflag [#allocation6], 1
    %12 = vsyncpa %s11, 0
    %13 = vsyncpa [#allocation4], 0
    %s14 = scalar_lea.sflag [#allocation4], 1
    %15 = vsyncpa %s14, 0
    loop: start=0, step=1, limit=6
    $region2: #{tpu_custom_call.1} parent=1 // loop_pre_header
      _
    $region3: #{tpu_custom_call.1} parent=1 // loop_header
      %s17 = sphi 0, %s21
      %p18 = scmp.ge.s32.totalorder %s17, 6
      %s24 = sphi 0, %s36
      %s25 = sphi 0, %s32
      %s26 = sphi 0, %s24
      %s27 = sphi 0, %s25
      %s28 = sphi 0, %s26
      %s29 = sphi 0, %s27
      %s41 = sphi 0, %s43
      %s44 = sphi 0, %s41
      %s45 = sphi 0, %s44
      %s61 = sphi 0, %s45
      %s69 = sphi 0, %s71
      %s72 = sphi 0, %s69
      %s73 = sphi 0, %s72
      %s89 = sphi 0, %s73
      %s95 = sphi 0, %s97
      %s98 = sphi 0, %s95
      %s99 = sphi 0, %s98
      %s115 = sphi 0, %s99
    $region4: #{tpu_custom_call.1} parent=1 // loop_header_branch
      %20 = sbr.rel (%p18) target = $region8
    $region5: #{tpu_custom_call.1} parent=1 // loop_body
      %s22 = ssub.s32 %s17, 1
      %s23 = ssub.s32 %s17, 2
      %s30 = sadd.s32 1, %s25
      %p31 = scmp.ge.s32.totalorder %s30, 2
      %s32 = scalar_select %p31, 0, %s30
      %s33 = sadd.s32 1, %s24
      %s34 = scalar_select %p31, %s33, %s24
      %p35 = scmp.ge.s32.totalorder %s34, 2
      %s36 = scalar_select %p35, 0, %s34
      %s37 = ssub.s32 %s24, %s36
      %s38 = ssub.s32 %s25, %s32
      %s39 = sor.u32 %s37, %s38
      %p40 = scmp.eq.s32.totalorder %s39, 0
      %s42 = sadd.s32 %s41, 1
      %s43 = scalar_select %p40, %s41, %s42
      %p46 = pneg %p40
      %p47 = scmp.eq.s32.totalorder %s17, 3
      %p48 = por %p46, %p47
      %p49 = scmp.ne.s32.totalorder %s41, %s44
      %p50 = scmp.eq.s32.totalorder %s17, 0
      %p51 = por %p49, %p50
      %p52 = scmp.ne.s32.totalorder %s41, %s44
      %p53 = scmp.eq.s32.totalorder %s22, 3
      %p54 = por %p52, %p53
      %p55 = scmp.ne.s32.totalorder %s44, %s45
      %p56 = scmp.eq.s32.totalorder %s22, 0
      %p57 = por %p55, %p56
      %p58 = scmp.ne.s32.totalorder %s44, %s45
      %p59 = scmp.eq.s32.totalorder %s23, 3
      %p60 = por %p58, %p59
      %p62 = scmp.ne.s32.totalorder %s45, %s61
      %p63 = scmp.eq.s32.totalorder %s23, 0
      %p64 = por %p62, %p63
      %s65 = ssub.s32 %s24, %s36
      %s66 = ssub.s32 %s25, %s32
      %s67 = sor.u32 %s65, %s66
      %p68 = scmp.eq.s32.totalorder %s67, 0
      %s70 = sadd.s32 %s69, 1
      %s71 = scalar_select %p68, %s69, %s70
      %p74 = pneg %p68
      %p75 = scmp.eq.s32.totalorder %s17, 3
      %p76 = por %p74, %p75
      %p77 = scmp.ne.s32.totalorder %s69, %s72
      %p78 = scmp.eq.s32.totalorder %s17, 0
      %p79 = por %p77, %p78
      %p80 = scmp.ne.s32.totalorder %s69, %s72
      %p81 = scmp.eq.s32.totalorder %s22, 3
      %p82 = por %p80, %p81
      %p83 = scmp.ne.s32.totalorder %s72, %s73
      %p84 = scmp.eq.s32.totalorder %s22, 0
      %p85 = por %p83, %p84
      %p86 = scmp.ne.s32.totalorder %s72, %s73
      %p87 = scmp.eq.s32.totalorder %s23, 3
      %p88 = por %p86, %p87
      %p90 = scmp.ne.s32.totalorder %s73, %s89
      %p91 = scmp.eq.s32.totalorder %s23, 0
      %p92 = por %p90, %p91
      %s93 = ssub.s32 %s24, %s36
      %p94 = scmp.eq.s32.totalorder %s93, 0
      %s96 = sadd.s32 %s95, 1
      %s97 = scalar_select %p94, %s95, %s96
      %p100 = pneg %p94
      %p101 = scmp.eq.s32.totalorder %s17, 3
      %p102 = por %p100, %p101
      %p103 = scmp.ne.s32.totalorder %s95, %s98
      %p104 = scmp.eq.s32.totalorder %s17, 0
      %p105 = por %p103, %p104
      %p106 = scmp.ne.s32.totalorder %s95, %s98
      %p107 = scmp.eq.s32.totalorder %s22, 3
      %p108 = por %p106, %p107
      %p109 = scmp.ne.s32.totalorder %s98, %s99
      %p110 = scmp.eq.s32.totalorder %s22, 0
      %p111 = por %p109, %p110
      %p112 = scmp.ne.s32.totalorder %s98, %s99
      %p113 = scmp.eq.s32.totalorder %s23, 3
      %p114 = por %p112, %p113
      %p116 = scmp.ne.s32.totalorder %s99, %s115
      %p117 = scmp.eq.s32.totalorder %s23, 0
      %p118 = por %p116, %p117
      %p119 = scmp.le.s32.totalorder 1, %s17
      %p120 = scmp.lt.s32.totalorder %s17, 5
      %p121 = pnand %p119, %p120
      %p122 = pneg %p121
      // Predicated region
      $region9: #{tpu_custom_call.1} parent=5 // pred_check
        _
      $region10: #{tpu_custom_call.1} parent=5 // pred_check_branch
        %124 = sbr.rel (%p121) target = $region12
      $region11: #{tpu_custom_call.1} parent=5 // pred_region
        %s125 = ssub.s32 %s17, 1
      $region12: #{tpu_custom_call.1} parent=5 // pred_fallthru
        _
      %p126 = scmp.lt.s32.totalorder %s17, 4
      // Predicated region
      $region13: #{tpu_custom_call.1} parent=5 // pred_check
        %p127 = pneg %p126
      $region14: #{tpu_custom_call.1} parent=5 // pred_check_branch
        %129 = sbr.rel (%p127) target = $region16
      $region15: #{tpu_custom_call.1} parent=5 // pred_region
        // Predicated region
        $region17: #{tpu_custom_call.1} parent=15 // pred_check
          %p130 = pneg %p51
        $region18: #{tpu_custom_call.1} parent=15 // pred_check_branch
          %132 = sbr.rel (%p130) target = $region20
        $region19: #{tpu_custom_call.1} parent=15 // pred_region
          %s133 = sand.u32 %s41, 1
          %s134 = scalar_lea.sflag [#allocation3], %s133
          %s135 = sand.u32 %s41, 1
          %s136 = smul.addr %s135, 4
          %s137 = scalar_lea.vmem [#allocation2], %s136
          %s139 = ssub.s32 64, 64
          %140 = vsyncadd %s134, %s139
          %s141 = smul.addr %s24, 2
          %s142 = sadd.s32 %s25, %s141
          %s143 = smul.addr %s142, 64
          %s144 = scalar_lea.hbm %s0, %s143
          %s146 = sshll.u32 %s137, 4
          %s147 = int_to_ptr.vmem [resolvable:$true] %s146
          %149 = dma.hbm_to_vmem [thread:$0]  %s144, 64, %s147, %s134
        $region20: #{tpu_custom_call.1} parent=15 // pred_fallthru
          _
        // Predicated region
        $region21: #{tpu_custom_call.1} parent=15 // pred_check
          %p150 = pneg %p79
        $region22: #{tpu_custom_call.1} parent=15 // pred_check_branch
          %152 = sbr.rel (%p150) target = $region24
        $region23: #{tpu_custom_call.1} parent=15 // pred_region
          %s153 = sand.u32 %s69, 1
          %s154 = scalar_lea.sflag [#allocation6], %s153
          %s155 = sand.u32 %s69, 1
          %s156 = scalar_lea.vmem [#allocation5], %s155
          %s158 = ssub.s32 16, 16
          %159 = vsyncadd %s154, %s158
          %s160 = smul.addr %s24, 2
          %s161 = sadd.s32 %s25, %s160
          %s162 = smul.addr %s161, 16
          %s163 = scalar_lea.hbm %s1, %s162
          %s165 = sshll.u32 %s156, 4
          %s166 = int_to_ptr.vmem [resolvable:$true] %s165
          %168 = dma.hbm_to_vmem [thread:$0]  %s163, 16, %s166, %s154
        $region24: #{tpu_custom_call.1} parent=15 // pred_fallthru
          _
      $region16: #{tpu_custom_call.1} parent=5 // pred_fallthru
        _
      %p169 = scmp.le.s32.totalorder 1, %s17
      %p170 = scmp.lt.s32.totalorder %s17, 5
      %p171 = pnand %p169, %p170
      %p172 = pneg %p171
      // Predicated region
      $region25: #{tpu_custom_call.1} parent=5 // pred_check
        _
      $region26: #{tpu_custom_call.1} parent=5 // pred_check_branch
        %174 = sbr.rel (%p171) target = $region28
      $region27: #{tpu_custom_call.1} parent=5 // pred_region
        %s175 = ssub.s32 %s17, 1
        %s176 = sand.u32 %s44, 1
        %s177 = scalar_lea.sflag [#allocation3], %s176
        %s178 = sand.u32 %s44, 1
        %s179 = smul.addr %s178, 4
        %s180 = scalar_lea.vmem [#allocation2], %s179
        // Predicated region
        $region29: #{tpu_custom_call.1} parent=27 // pred_check
          %p181 = pneg %p57
        $region30: #{tpu_custom_call.1} parent=27 // pred_check_branch
          %183 = sbr.rel (%p181) target = $region32
        $region31: #{tpu_custom_call.1} parent=27 // pred_region
          %184 = dma.done %s177, 64
        $region32: #{tpu_custom_call.1} parent=27 // pred_fallthru
          _
        %s185 = sand.u32 %s72, 1
        %s186 = scalar_lea.sflag [#allocation6], %s185
        %s187 = sand.u32 %s72, 1
        %s188 = scalar_lea.vmem [#allocation5], %s187
        // Predicated region
        $region33: #{tpu_custom_call.1} parent=27 // pred_check
          %p189 = pneg %p85
        $region34: #{tpu_custom_call.1} parent=27 // pred_check_branch
          %191 = sbr.rel (%p189) target = $region36
        $region35: #{tpu_custom_call.1} parent=27 // pred_region
          %192 = dma.done %s186, 16
        $region36: #{tpu_custom_call.1} parent=27 // pred_fallthru
          _
        %s193 = sand.u32 %s44, 1
        %s194 = scalar_lea.sflag [#allocation3], %s193
        %s195 = sand.u32 %s44, 1
        %s196 = smul.addr %s195, 4
        %s197 = scalar_lea.vmem [#allocation2], %s196
        %p198 = pneg %p57
        %p199 = pneg %p54
        %s200 = sand.u32 %s72, 1
        %s201 = scalar_lea.sflag [#allocation6], %s200
        %s202 = sand.u32 %s72, 1
        %s203 = scalar_lea.vmem [#allocation5], %s202
        %p204 = pneg %p85
        %p205 = pneg %p82
        %p206 = pneg %p111
        %p207 = pneg %p108
        %s208 = sand.u32 %s98, 1
        %s209 = scalar_lea.sflag [#allocation4], %s208
        %s210 = sand.u32 %s98, 1
        %s211 = smul.addr %s210, 8
        %s212 = scalar_lea.vmem [#allocation7], %s211
        %v213 = vld [vmem:[%s180] sm:$0xf]
        %vm214 = vcmask 1043456
        %v215 = vsel %vm214, %v213, -inf
        %v216 = vrot.slane %v215, 4
        %v217 = vmax.f32 %v215, %v216
        %v218 = vrot.slane %v217, 2
        %v219 = vmax.f32 %v217, %v218
        %v220 = vrot.slane %v219, 1
        %v221 = vmax.f32 %v219, %v220
        %v222 = vsub.f32 %v213, %v221
        %v223 = vmul.f32 %v222, 1.442695
        %v224 = vpow.pop %v223
        %v225 = vsel %vm214, %v224, 0.0
        %v226 = vrot.slane %v225, 4
        %v227 = vadd.f32 %v225, %v226
        %v228 = vrot.slane %v227, 2
        %v229 = vadd.f32 %v227, %v228
        %v230 = vrot.slane %v229, 1
        %v231 = vadd.f32 %v229, %v230
        %v232 = vrcp.pop %v231
        %v233 = vmul.f32 %v224, %v232
        %v234 = vld [vmem:[%s188] sm:$0x1]
        %v235 = vlaneseq
        %v236 = vshrl.u32 %v235, 7
        %v237 = vlaneseq
        %v238 = vshrl.u32 %v237, 7
        %v239 = vsub.s32 0, %v238
        %v240 = vrot.slane %v234, %v239
        %vm241 = vcmp.eq.s32.totalorder %v240, %v236
        %v242 = vsel %vm241, 1, 0
        %v243 = vcvt.s32.f32 %v242
        %v245 = vrot.slane %v243, 4
        %v247 = vsel %vm214, %v233, %v245
        %248 = vmatprep.subr.mxu0 0.0
        %249 = vmatpush1.xpose.msra.mxu0 %v247
        %250 = vmatprep.subr.mxu0 0.0
        %251 = vmatpush1.xpose.msra.mxu0 0.0
        %252 = vmatprep.subr.mxu0 0.0
        %253 = vmatpush1.xpose.msra.mxu0 0.0
        %254 = vmatprep.subr.mxu0 0.0
        %255 = vmatpush1.xpose.msra.mxu0 0.0
        %256 = vmatprep.subr.mxu0 0.0
        %257 = vmatpush1.xpose.msra.mxu0 0.0
        %258 = vmatprep.subr.mxu0 0.0
        %259 = vmatpush1.xpose.msra.mxu0 0.0
        %260 = vmatprep.subr.mxu0 0.0
        %261 = vmatpush1.xpose.msra.mxu0 0.0
        %262 = vmatprep.subr.mxu0 0.0
        %263 = vmatpush1.xpose.msra.mxu0 0.0
        %264 = vmatprep.subr.mxu0 0.0
        %265 = vmatpush1.xpose.msra.mxu0 0.0
        %266 = vmatprep.subr.mxu0 0.0
        %267 = vmatpush1.xpose.msra.mxu0 0.0
        %268 = vmatprep.subr.mxu0 0.0
        %269 = vmatpush1.xpose.msra.mxu0 0.0
        %270 = vmatprep.subr.mxu0 0.0
        %271 = vmatpush1.xpose.msra.mxu0 0.0
        %272 = vmatprep.subr.mxu0 0.0
        %273 = vmatpush1.xpose.msra.mxu0 0.0
        %274 = vmatprep.subr.mxu0 0.0
        %275 = vmatpush1.xpose.msra.mxu0 0.0
        %276 = vmatprep.subr.mxu0 0.0
        %277 = vmatpush1.xpose.msra.mxu0 0.0
        %278 = vmatprep.subr.mxu0 0.0
        %279 = vmatpush1.xpose.msra.mxu0 0.0
        %280 = vmatprep.subr.mxu0 0.0
        %281 = vmatpush1.xpose.msra.mxu0 0.0
        %282 = vmatprep.subr.mxu0 0.0
        %283 = vmatpush1.xpose.msra.mxu0 0.0
        %284 = vmatprep.subr.mxu0 0.0
        %285 = vmatpush1.xpose.msra.mxu0 0.0
        %286 = vmatprep.subr.mxu0 0.0
        %287 = vmatpush1.xpose.msra.mxu0 0.0
        %288 = vmatprep.subr.mxu0 0.0
        %289 = vmatpush1.xpose.msra.mxu0 0.0
        %290 = vmatprep.subr.mxu0 0.0
        %291 = vmatpush1.xpose.msra.mxu0 0.0
        %292 = vmatprep.subr.mxu0 0.0
        %293 = vmatpush1.xpose.msra.mxu0 0.0
        %294 = vmatprep.subr.mxu0 0.0
        %295 = vmatpush1.xpose.msra.mxu0 0.0
        %296 = vmatprep.subr.mxu0 0.0
        %297 = vmatpush1.xpose.msra.mxu0 0.0
        %298 = vmatprep.subr.mxu0 0.0
        %299 = vmatpush1.xpose.msra.mxu0 0.0
        %300 = vmatprep.subr.mxu0 0.0
        %301 = vmatpush1.xpose.msra.mxu0 0.0
        %302 = vmatprep.subr.mxu0 0.0
        %303 = vmatpush1.xpose.msra.mxu0 0.0
        %304 = vmatprep.subr.mxu0 0.0
        %305 = vmatpush1.xpose.msra.mxu0 0.0
        %306 = vmatprep.subr.mxu0 0.0
        %307 = vmatpush1.xpose.msra.mxu0 0.0
        %308 = vmatprep.subr.mxu0 0.0
        %309 = vmatpush1.xpose.msra.mxu0 0.0
        %310 = vmatprep.subr.mxu0 0.0
        %311 = vmatpush1.xpose.msra.mxu0 0.0
        %312 = vmatprep.mubr.f32.mxu0 0.0
        %313 = vmatmul.mubr.f32.gmra.mrb[0].mxu0 %v247
        %v314 = vpop.f32.mrb[0].mxu0
        %v315 = vadd.f32 0.0, %v314
        %v316 = vpop.f32.mrb[0].mxu0
        %317 = vdwg.mxu0
        %p318 = scmp.eq.s32.totalorder %s27, 0
        // Predicated region
        $region37: #{tpu_custom_call.1} parent=27 // pred_check
          %p319 = pneg %p318
        $region38: #{tpu_custom_call.1} parent=27 // pred_check_branch
          %321 = sbr.rel (%p319) target = $region40
        $region39: #{tpu_custom_call.1} parent=27 // pred_region
          %vm322 = vcmask 64512
          %323 = vst.msk [vmem:[%s212] sm:$0xff] %vm322, 0.0
        $region40: #{tpu_custom_call.1} parent=27 // pred_fallthru
          _
        %v324 = vld [vmem:[%s212] sm:$0xff]
        %v325 = vadd.f32 %v324, %v315
        %vm326 = vcmask 64512
        %327 = vst.msk [vmem:[%s212] sm:$0xff] %vm326, %v325
        %s328 = sand.u32 %s98, 1
        %s329 = scalar_lea.sflag [#allocation4], %s328
        %s330 = sand.u32 %s98, 1
        %s331 = smul.addr %s330, 8
        %s332 = scalar_lea.vmem [#allocation7], %s331
        // Predicated region
        $region41: #{tpu_custom_call.1} parent=27 // pred_check
          %p333 = pneg %p108
        $region42: #{tpu_custom_call.1} parent=27 // pred_check_branch
          %335 = sbr.rel (%p333) target = $region44
        $region43: #{tpu_custom_call.1} parent=27 // pred_region
          %s337 = ssub.s32 128, 128
          %338 = vsyncadd %s329, %s337
          %s339 = smul.addr %s26, 128
          %s340 = scalar_lea.hbm %s2, %s339
          %s342 = sshll.u32 %s332, 4
          %s343 = int_to_ptr.vmem [resolvable:$true] %s342
          %345 = dma.vmem_to_hbm [thread:$0]  %s343, 128, %s340, %s329
        $region44: #{tpu_custom_call.1} parent=27 // pred_fallthru
          _
      $region28: #{tpu_custom_call.1} parent=5 // pred_fallthru
        _
      %p346 = scmp.le.s32.totalorder 2, %s17
      // Predicated region
      $region45: #{tpu_custom_call.1} parent=5 // pred_check
        %p347 = pneg %p346
      $region46: #{tpu_custom_call.1} parent=5 // pred_check_branch
        %349 = sbr.rel (%p347) target = $region48
      $region47: #{tpu_custom_call.1} parent=5 // pred_region
        %s350 = ssub.s32 %s17, 2
        // Predicated region
        $region49: #{tpu_custom_call.1} parent=47 // pred_check
          %p351 = pneg %p114
        $region50: #{tpu_custom_call.1} parent=47 // pred_check_branch
          %353 = sbr.rel (%p351) target = $region52
        $region51: #{tpu_custom_call.1} parent=47 // pred_region
          %s354 = sand.u32 %s99, 1
          %s355 = scalar_lea.sflag [#allocation4], %s354
          %s356 = sand.u32 %s99, 1
          %s357 = smul.addr %s356, 8
          %s358 = scalar_lea.vmem [#allocation7], %s357
          %359 = dma.done %s355, 128
        $region52: #{tpu_custom_call.1} parent=47 // pred_fallthru
          _
      $region48: #{tpu_custom_call.1} parent=5 // pred_fallthru
        _
    $region6: #{tpu_custom_call.1} parent=1 // loop_footer
      %s21 = sadd.s32 1, %s17
    $region7: #{tpu_custom_call.1} parent=1 // loop_footer_branch
      %16 = sbr.rel target = $region3
    $region8: #{tpu_custom_call.1} parent=1 // loop_exit
      _
    %360 = vsyncpa [#allocation3], 1
    %s361 = scalar_lea.sflag [#allocation3], 1
    %362 = vsyncpa %s361, 1
    %363 = vsyncpa [#allocation6], 1
    %s364 = scalar_lea.sflag [#allocation6], 1
    %365 = vsyncpa %s364, 1
    %366 = vsyncpa [#allocation4], 1
    %s367 = scalar_lea.sflag [#allocation4], 1
    %368 = vsyncpa %s367, 1

</llo_original>
